<compile_context>
chip_gen: v6e
topology: v6e:2x2x1
jax: 0.10.0
libtpu: 0.0.40
codegen_flags: <defaults>
</compile_context>

<pallas_src>
import jax
import jax.numpy as jnp
from jax import lax
from jax.experimental import pallas as pl
from jax.experimental.pallas import tpu as pltpu


# ---------------------------------------------------------------- kernels ---

def _pool_kernel(x_ref, p_ref):
    # x_ref: (C, T) one spatial tile of one batch element (lanes = spatial).
    # p_ref: (2, T)  row 0 = channel mean, row 1 = channel max (f32).
    x = x_ref[...]
    c = x.shape[0]
    # Max stays in the input dtype; only the mean accumulates in f32 (avoids a
    # full f32 copy of the (C, T) tile for sub-32-bit inputs).
    p_ref[0:1, :] = jnp.sum(x, axis=0, keepdims=True, dtype=jnp.float32) * (1.0 / c)
    p_ref[1:2, :] = jnp.max(x, axis=0, keepdims=True).astype(jnp.float32)


def _scale_kernel(x_ref, y_ref, o_ref):
    # x_ref: (C, T); y_ref: (1, T) pre-sigmoid conv output (f32); o_ref: (C, T).
    # Sigmoid in f32 on the tiny (1, T) row (EUP slot); multiply the dominant
    # (C, T) tile in the input dtype (no full-tile upcast -> less vreg pressure).
    gate = jax.nn.sigmoid(y_ref[...].astype(jnp.float32)).astype(x_ref.dtype)
    o_ref[...] = (x_ref[...] * gate).astype(o_ref.dtype)


# ---------------------------------------------------------------- wrapper ---

def _cdiv(a, b):
    return (a + b - 1) // b


def _round_up(a, m):
    return _cdiv(a, m) * m


def _vmem_limit_bytes():
    """Generation-aware scoped-VMEM budget.

    v7x:  64 MiB physical VMEM/TC -> 48 MiB scoped.
    v5e/v6e: 128 MiB physical      -> 64 MiB scoped.
    Unknown / query failure        -> conservative 48 MiB (safe everywhere).
    """
    try:
        phys = int(getattr(pltpu.get_tpu_info(), "vmem_capacity_bytes", 0) or 0)
        if phys > 0:
            return min(64 * 1024 * 1024, (phys * 3) // 4)
    except Exception:
        pass
    return 48 * 1024 * 1024


def _choose_hw_tile(hw, c, itemsize, target_tile_bytes, batch):
    """Lane tile T: largest multiple of 128 keeping the (C, T) x-tile under
    budget. cdiv grid with a masked partial tail, so T need NOT divide HW."""
    if hw <= 128:
        return hw                      # single tile == full dim (always legal)
    max_lanes = max(128, (target_tile_bytes // max(1, c * itemsize)) // 128 * 128)
    t = min(max_lanes, _round_up(hw, 128))
    # v7x megacore: keep >= ~4 grid steps so both TensorCores get work; this
    # only triggers when total work is tiny, so v5e/v6e are unaffected.
    while t > 128 and batch * _cdiv(hw, t) < 4:
        t = max(128, (t // 2) // 128 * 128)
    return t


def spatial_attention(x_nchw, conv_w):
    """x_nchw: (B, C, H, W); conv_w: (1, 2, K, K), bias-free, padding=(K-1)//2."""
    B, C, H, W = x_nchw.shape
    K = conv_w.shape[-1]
    pad = (K - 1) // 2
    HW = H * W
    dtype = x_nchw.dtype
    itemsize = jnp.dtype(dtype).itemsize

    x = x_nchw.reshape(B, C, HW)       # metadata-only reshape, no HBM copy

    vmem_limit = _vmem_limit_bytes()
    # Pass-2 double-buffered working set ~= 4x the (C, T) x-tile; keep headroom.
    target_tile_bytes = min(8 * 1024 * 1024, vmem_limit // 5)
    T = _choose_hw_tile(HW, C, itemsize, target_tile_bytes, B)
    grid = (B, _cdiv(HW, T))

    cparams = pltpu.CompilerParams(
        dimension_semantics=("parallel", "parallel"),
        vmem_limit_bytes=vmem_limit)

    # -- pass 1: channel pooling (mean & max over C), tiled over HW ----------
    # Output kept at exact shape (B, 2, HW): writes from the masked tail tile
    # (spatial positions >= HW) are discarded, so the conv never sees garbage.
    pooled = pl.pallas_call(
        _pool_kernel,
        out_shape=jax.ShapeDtypeStruct((B, 2, HW), jnp.float32),
        grid_spec=pltpu.PrefetchScalarGridSpec(
            num_scalar_prefetch=0,
            grid=grid,
            in_specs=[pl.BlockSpec((pl.Squeezed(), C, T), lambda b, t: (b, 0, t))],
            out_specs=pl.BlockSpec((pl.Squeezed(), 2, T), lambda b, t: (b, 0, t)),
        ),
        compiler_params=cparams,
        cost_estimate=pl.CostEstimate(
            flops=2 * B * C * HW,
            transcendentals=0,
            bytes_accessed=B * C * HW * itemsize + 2 * B * HW * 4),
    )(x)

    # -- middle: tiny KxK conv (2 -> 1 channels) on the pooled map -----------
    # TODO(synk): the KxK conv needs spatial halos across HW tiles; it is
    # O(B*2*HW) work vs O(B*C*HW) bytes for the two big passes, so it is left
    # to XLA between the two Pallas calls (fusing it as K*K shifted MACs inside
    # pass 2 only matters when B*HW is small enough that launch overhead wins).
    y = lax.conv_general_dilated(
        pooled.reshape(B, 2, H, W), conv_w.astype(jnp.float32),
        window_strides=(1, 1),
        padding=((pad, pad), (pad, pad)),
        dimension_numbers=("NCHW", "OIHW", "NCHW"))            # (B, 1, H, W)
    y = y.reshape(B, 1, HW)

    # -- pass 2: out = x * sigmoid(y), tiled over HW --------------------------
    out = pl.pallas_call(
        _scale_kernel,
        out_shape=jax.ShapeDtypeStruct((B, C, HW), dtype),
        grid_spec=pltpu.PrefetchScalarGridSpec(
            num_scalar_prefetch=0,
            grid=grid,
            in_specs=[
                pl.BlockSpec((pl.Squeezed(), C, T), lambda b, t: (b, 0, t)),
                pl.BlockSpec((pl.Squeezed(), 1, T), lambda b, t: (b, 0, t)),
            ],
            out_specs=pl.BlockSpec((pl.Squeezed(), C, T), lambda b, t: (b, 0, t)),
        ),
        compiler_params=cparams,
        cost_estimate=pl.CostEstimate(
            flops=B * C * HW,
            transcendentals=B * HW,
            bytes_accessed=2 * B * C * HW * itemsize + B * HW * 4),
    )(x, y)

    return out.reshape(B, C, H, W)


# -------------------------------------------------------------- reference ---

def spatial_attention_ref(x, conv_w):
    pad = (conv_w.shape[-1] - 1) // 2
    avg = jnp.mean(x, axis=1, keepdims=True)
    mx = jnp.max(x, axis=1, keepdims=True)
    y = jnp.concatenate([avg, mx], axis=1)
    y = lax.conv_general_dilated(
        y, conv_w, window_strides=(1, 1),
        padding=((pad, pad), (pad, pad)),
        dimension_numbers=("NCHW", "OIHW", "NCHW"))
    return x * jax.nn.sigmoid(y)


if __name__ == "__main__":
    key = jax.random.PRNGKey(0)
    kx, kw, kx2 = jax.random.split(key, 3)

    # Small shapes consistent with the module (kernel_size=7 -> padding=3).
    B, C, H, W, K = 2, 4, 16, 16, 7
    x = jax.random.normal(kx, (B, C, H, W), dtype=jnp.float32)
    conv_w = jax.random.normal(kw, (1, 2, K, K), dtype=jnp.float32) * 0.1

    fn = jax.jit(spatial_attention)

    out = jax.block_until_ready(fn(x, conv_w))
    ref = spatial_attention_ref(x, conv_w)
    assert jnp.allclose(out, ref, atol=1e-4, rtol=1e-4), "mismatch vs reference"

    # Non-lane-aligned spatial size (10*10=100) exercises the masked-tail path.
    x2 = jax.random.normal(kx2, (2, 6, 10, 10), dtype=jnp.float32)
    out2 = jax.block_until_ready(fn(x2, conv_w))
    ref2 = spatial_attention_ref(x2, conv_w)
    assert jnp.allclose(out2, ref2, atol=1e-4, rtol=1e-4), "mismatch (tail path)"

    print("KERNEL_OK")
</pallas_src>

<mosaic_0001>
module attributes {stable_mosaic.version = 11 : i64} {
  func.func @_pool_kernel(%arg0: i32, %arg1: i32, %arg2: memref<1x4x128xf32, #tpu.memory_space<vmem>>, %arg3: memref<1x2x128xf32, #tpu.memory_space<vmem>>) attributes {dimension_semantics = [#tpu.dimension_semantics<parallel>, #tpu.dimension_semantics<parallel>], iteration_bounds = array<i64: 2, 2>, scalar_prefetch = 0 : i64, scratch_operands = 0 : i64, tpu.core_type = #tpu.core_type<tc>, window_params = [{transform_indices = @transform_0, window_bounds = array<i64: 1, 4, 128>}, {transform_indices = @transform_1, window_bounds = array<i64: 1, 2, 128>}]} {
    %c0 = arith.constant 0 : index
    %c0_0 = arith.constant 0 : index
    %c0_1 = arith.constant 0 : index
    %0 = vector.load %arg2[%c0, %c0_0, %c0_1] : memref<1x4x128xf32, #tpu.memory_space<vmem>>, vector<1x4x128xf32>
    %1 = vector.shape_cast %0 : vector<1x4x128xf32> to vector<4x128xf32>
    %cst = arith.constant dense<0.000000e+00> : vector<128xf32>
    %2 = vector.multi_reduction <add>, %1, %cst [0] : vector<4x128xf32> to vector<128xf32>
    %3 = vector.shape_cast %2 : vector<128xf32> to vector<1x128xf32>
    %cst_2 = arith.constant 2.500000e-01 : f32
    %4 = vector.broadcast %cst_2 : f32 to vector<1x128xf32>
    %5 = arith.mulf %3, %4 : vector<1x128xf32>
    %c0_3 = arith.constant 0 : index
    %c0_4 = arith.constant 0 : index
    %c0_5 = arith.constant 0 : index
    %6 = vector.load %arg3[%c0_3, %c0_4, %c0_5] : memref<1x2x128xf32, #tpu.memory_space<vmem>>, vector<1x1x128xf32>
    %7 = vector.shape_cast %6 : vector<1x1x128xf32> to vector<1x128xf32>
    %8 = vector.shape_cast %5 : vector<1x128xf32> to vector<1x1x128xf32>
    tpu.vector_store %arg3[%c0_3, %c0_4, %c0_5], %8 {strides = array<i32>} : memref<1x2x128xf32, #tpu.memory_space<vmem>>, vector<1x1x128xf32>,
    %cst_6 = arith.constant dense<0xFF800000> : vector<128xf32>
    %9 = vector.multi_reduction <maximumf>, %1, %cst_6 [0] : vector<4x128xf32> to vector<128xf32>
    %10 = vector.shape_cast %9 : vector<128xf32> to vector<1x128xf32>
    %c0_7 = arith.constant 0 : index
    %c1 = arith.constant 1 : index
    %c0_8 = arith.constant 0 : index
    %11 = vector.load %arg3[%c0_7, %c1, %c0_8] : memref<1x2x128xf32, #tpu.memory_space<vmem>>, vector<1x1x128xf32>
    %12 = vector.shape_cast %11 : vector<1x1x128xf32> to vector<1x128xf32>
    %13 = vector.shape_cast %10 : vector<1x128xf32> to vector<1x1x128xf32>
    tpu.vector_store %arg3[%c0_7, %c1, %c0_8], %13 {strides = array<i32>} : memref<1x2x128xf32, #tpu.memory_space<vmem>>, vector<1x1x128xf32>,
    return
  }
  func.func @transform_0(%arg0: i32, %arg1: i32) -> (i32, i32, i32) {
    %c0_i32 = arith.constant 0 : i32
    %c0_i32_0 = arith.constant 0 : i32
    return %arg0, %c0_i32, %arg1 : i32, i32, i32
  }
  func.func @transform_1(%arg0: i32, %arg1: i32) -> (i32, i32, i32) {
    %c0_i32 = arith.constant 0 : i32
    %c0_i32_0 = arith.constant 0 : i32
    return %arg0, %c0_i32, %arg1 : i32, i32, i32
  }
}

module attributes {stable_mosaic.version = 11 : i64} {
  func.func @_scale_kernel(%arg0: i32, %arg1: i32, %arg2: memref<1x4x128xf32, #tpu.memory_space<vmem>>, %arg3: memref<1x1x128xf32, #tpu.memory_space<vmem>>, %arg4: memref<1x4x128xf32, #tpu.memory_space<vmem>>) attributes {dimension_semantics = [#tpu.dimension_semantics<parallel>, #tpu.dimension_semantics<parallel>], iteration_bounds = array<i64: 2, 2>, scalar_prefetch = 0 : i64, scratch_operands = 0 : i64, tpu.core_type = #tpu.core_type<tc>, window_params = [{transform_indices = @transform_0, window_bounds = array<i64: 1, 4, 128>}, {transform_indices = @transform_1, window_bounds = array<i64: 1, 1, 128>}, {transform_indices = @transform_2, window_bounds = array<i64: 1, 4, 128>}]} {
    %c0 = arith.constant 0 : index
    %c0_0 = arith.constant 0 : index
    %c0_1 = arith.constant 0 : index
    %0 = vector.load %arg3[%c0, %c0_0, %c0_1] : memref<1x1x128xf32, #tpu.memory_space<vmem>>, vector<1x1x128xf32>
    %1 = vector.shape_cast %0 : vector<1x1x128xf32> to vector<1x128xf32>
    %2 = arith.negf %1 : vector<1x128xf32>
    %3 = math.exp %2 : vector<1x128xf32>
    %cst = arith.constant 1.000000e+00 : f32
    %4 = vector.broadcast %cst : f32 to vector<1x128xf32>
    %5 = arith.addf %4, %3 : vector<1x128xf32>
    %6 = arith.divf %4, %5 : vector<1x128xf32>
    %c0_2 = arith.constant 0 : index
    %c0_3 = arith.constant 0 : index
    %c0_4 = arith.constant 0 : index
    %7 = vector.load %arg2[%c0_2, %c0_3, %c0_4] : memref<1x4x128xf32, #tpu.memory_space<vmem>>, vector<1x4x128xf32>
    %8 = vector.shape_cast %7 : vector<1x4x128xf32> to vector<4x128xf32>
    %9 = vector.broadcast %6 : vector<1x128xf32> to vector<4x128xf32>
    %10 = arith.mulf %8, %9 : vector<4x128xf32>
    %c0_5 = arith.constant 0 : index
    %c0_6 = arith.constant 0 : index
    %c0_7 = arith.constant 0 : index
    %11 = vector.load %arg4[%c0_5, %c0_6, %c0_7] : memref<1x4x128xf32, #tpu.memory_space<vmem>>, vector<1x4x128xf32>
    %12 = vector.shape_cast %11 : vector<1x4x128xf32> to vector<4x128xf32>
    %13 = vector.shape_cast %10 : vector<4x128xf32> to vector<1x4x128xf32>
    tpu.vector_store %arg4[%c0_5, %c0_6, %c0_7], %13 {strides = array<i32>} : memref<1x4x128xf32, #tpu.memory_space<vmem>>, vector<1x4x128xf32>,
    return
  }
  func.func @transform_0(%arg0: i32, %arg1: i32) -> (i32, i32, i32) {
    %c0_i32 = arith.constant 0 : i32
    %c0_i32_0 = arith.constant 0 : i32
    return %arg0, %c0_i32, %arg1 : i32, i32, i32
  }
  func.func @transform_1(%arg0: i32, %arg1: i32) -> (i32, i32, i32) {
    %c0_i32 = arith.constant 0 : i32
    %c0_i32_0 = arith.constant 0 : i32
    return %arg0, %c0_i32, %arg1 : i32, i32, i32
  }
  func.func @transform_2(%arg0: i32, %arg1: i32) -> (i32, i32, i32) {
    %c0_i32 = arith.constant 0 : i32
    %c0_i32_0 = arith.constant 0 : i32
    return %arg0, %c0_i32, %arg1 : i32, i32, i32
  }
}

</mosaic_0001>

<llo_original>
// kernel: spatial_attention.2
$region0: #{spatial_attention.2}
  #allocation0 [shape = 'u32[]', space=smem, size = 0x4, offset = 0x4, fixed_abs, tag = 'smem constant byte address 0x4 - core index']
  #allocation1 [shape = 'u32[144,128]{1,0:T(1,128)}', space=vmem, size = 0x12000, scoped, tag = 'internal scratch']
  %s0 = inlined_call_operand.vmem [shape: f32[2,4,256], index: 0, kind: input, shape index: {}]
  %s1 = inlined_call_operand.vmem [shape: f32[2,2,256], index: 1, kind: output, shape index: {}]
  %s2 = sld [smem:[#allocation0]]
  $region37: #{spatial_attention.2} parent=0
    _
  %s4 = ssub.s32 1, %s2
  %s5 = scalar_select 0, %s4, %s2
  loop: start=0, step=1, limit=6
  $region2: #{spatial_attention.2} parent=0 // loop_pre_header
    _
  $region3: #{spatial_attention.2} parent=0 // loop_header
    %s7 = sphi 0, %s11
    %p8 = scmp.ge.s32.totalorder %s7, 6
    %s14 = sphi 0, %s26
    %s15 = sphi 0, %s22
    %s16 = sphi 0, %s14
    %s17 = sphi 0, %s15
    %s18 = sphi 0, %s16
    %s19 = sphi 0, %s17
    %s31 = sphi 0, %s33
    %s34 = sphi 0, %s31
    %s35 = sphi 0, %s34
    %s51 = sphi 0, %s35
    %s59 = sphi 0, %s61
    %s62 = sphi 0, %s59
    %s63 = sphi 0, %s62
    %s79 = sphi 0, %s63
  $region4: #{spatial_attention.2} parent=0 // loop_header_branch
    %10 = sbr.rel (%p8) target = $region8
  $region5: #{spatial_attention.2} parent=0 // loop_body
    %s12 = ssub.s32 %s7, 1
    %s13 = ssub.s32 %s7, 2
    %s20 = sadd.s32 1, %s15
    %p21 = scmp.ge.s32.totalorder %s20, 2
    %s22 = scalar_select %p21, 0, %s20
    %s23 = sadd.s32 1, %s14
    %s24 = scalar_select %p21, %s23, %s14
    %p25 = scmp.ge.s32.totalorder %s24, 2
    %s26 = scalar_select %p25, 0, %s24
    %s27 = ssub.s32 %s14, %s26
    %s28 = ssub.s32 %s15, %s22
    %s29 = sor.u32 %s27, %s28
    %p30 = scmp.eq.s32.totalorder %s29, 0
    %s32 = sadd.s32 %s31, 1
    %s33 = scalar_select %p30, %s31, %s32
    %p36 = pneg %p30
    %p37 = scmp.eq.s32.totalorder %s7, 3
    %p38 = por %p36, %p37
    %p39 = scmp.ne.s32.totalorder %s31, %s34
    %p40 = scmp.eq.s32.totalorder %s7, 0
    %p41 = por %p39, %p40
    %p42 = scmp.ne.s32.totalorder %s31, %s34
    %p43 = scmp.eq.s32.totalorder %s12, 3
    %p44 = por %p42, %p43
    %p45 = scmp.ne.s32.totalorder %s34, %s35
    %p46 = scmp.eq.s32.totalorder %s12, 0
    %p47 = por %p45, %p46
    %p48 = scmp.ne.s32.totalorder %s34, %s35
    %p49 = scmp.eq.s32.totalorder %s13, 3
    %p50 = por %p48, %p49
    %p52 = scmp.ne.s32.totalorder %s35, %s51
    %p53 = scmp.eq.s32.totalorder %s13, 0
    %p54 = por %p52, %p53
    %s55 = ssub.s32 %s14, %s26
    %s56 = ssub.s32 %s15, %s22
    %s57 = sor.u32 %s55, %s56
    %p58 = scmp.eq.s32.totalorder %s57, 0
    %s60 = sadd.s32 %s59, 1
    %s61 = scalar_select %p58, %s59, %s60
    %p64 = pneg %p58
    %p65 = scmp.eq.s32.totalorder %s7, 3
    %p66 = por %p64, %p65
    %p67 = scmp.ne.s32.totalorder %s59, %s62
    %p68 = scmp.eq.s32.totalorder %s7, 0
    %p69 = por %p67, %p68
    %p70 = scmp.ne.s32.totalorder %s59, %s62
    %p71 = scmp.eq.s32.totalorder %s12, 3
    %p72 = por %p70, %p71
    %p73 = scmp.ne.s32.totalorder %s62, %s63
    %p74 = scmp.eq.s32.totalorder %s12, 0
    %p75 = por %p73, %p74
    %p76 = scmp.ne.s32.totalorder %s62, %s63
    %p77 = scmp.eq.s32.totalorder %s13, 3
    %p78 = por %p76, %p77
    %p80 = scmp.ne.s32.totalorder %s63, %s79
    %p81 = scmp.eq.s32.totalorder %s13, 0
    %p82 = por %p80, %p81
    %p83 = scmp.le.s32.totalorder 1, %s7
    %p84 = scmp.lt.s32.totalorder %s7, 5
    %p85 = pnand %p83, %p84
    %p86 = pneg %p85
    // Predicated region
    $region9: #{spatial_attention.2} parent=5 // pred_check
      _
    $region10: #{spatial_attention.2} parent=5 // pred_check_branch
      %88 = sbr.rel (%p85) target = $region12
    $region11: #{spatial_attention.2} parent=5 // pred_region
      %s89 = ssub.s32 %s7, 1
    $region12: #{spatial_attention.2} parent=5 // pred_fallthru
      _
    %p90 = scmp.lt.s32.totalorder %s7, 4
    // Predicated region
    $region13: #{spatial_attention.2} parent=5 // pred_check
      %p91 = pneg %p90
    $region14: #{spatial_attention.2} parent=5 // pred_check_branch
      %93 = sbr.rel (%p91) target = $region16
    $region15: #{spatial_attention.2} parent=5 // pred_region
      // Predicated region
      $region17: #{spatial_attention.2} parent=15 // pred_check
        %p94 = pneg %p41
      $region18: #{spatial_attention.2} parent=15 // pred_check_branch
        %96 = sbr.rel (%p94) target = $region20
      $region19: #{spatial_attention.2} parent=15 // pred_region
        %p97 = scmp.lt.s32.totalorder %s14, 1
        %s98 = scalar_select %p97, %s14, 1
        %p99 = scmp.lt.s32.totalorder %s15, 1
        %s100 = scalar_select %p99, %s15, 1
        %s101 = smul.addr %s98, 2
        %s102 = sadd.s32 %s100, %s101
        %s103 = smul.addr %s102, 4
        %s104 = scalar_lea.vmem %s0, %s103
      $region20: #{spatial_attention.2} parent=15 // pred_fallthru
        _
    $region16: #{spatial_attention.2} parent=5 // pred_fallthru
      _
    %p105 = scmp.le.s32.totalorder 1, %s7
    %p106 = scmp.lt.s32.totalorder %s7, 5
    %p107 = pnand %p105, %p106
    %p108 = pneg %p107
    // Predicated region
    $region21: #{spatial_attention.2} parent=5 // pred_check
      _
    $region22: #{spatial_attention.2} parent=5 // pred_check_branch
      %110 = sbr.rel (%p107) target = $region24
    $region23: #{spatial_attention.2} parent=5 // pred_region
      %s111 = ssub.s32 %s7, 1
      %p112 = scmp.lt.s32.totalorder %s16, 1
      %s113 = scalar_select %p112, %s16, 1
      %p114 = scmp.lt.s32.totalorder %s17, 1
      %s115 = scalar_select %p114, %s17, 1
      %s116 = smul.addr %s113, 2
      %s117 = sadd.s32 %s115, %s116
      %s118 = smul.addr %s117, 4
      %s119 = scalar_lea.vmem %s0, %s118
      %p120 = pneg %p47
      %p121 = pneg %p44
      %p122 = pneg %p75
      %p123 = pneg %p72
      %p124 = scmp.lt.s32.totalorder %s16, 1
      %s125 = scalar_select %p124, %s16, 1
      %p126 = scmp.lt.s32.totalorder %s17, 1
      %s127 = scalar_select %p126, %s17, 1
      %s128 = smul.addr %s125, 2
      %s129 = sadd.s32 %s127, %s128
      %s130 = smul.addr %s129, 2
      %s131 = scalar_lea.vmem %s1, %s130
      %p132 = scmp.lt.s32.totalorder %s16, 1
      %s133 = scalar_select %p132, %s16, 1
      %p134 = scmp.lt.s32.totalorder %s17, 1
      %s135 = scalar_select %p134, %s17, 1
      %s136 = smul.addr %s133, 2
      %s137 = sadd.s32 %s135, %s136
      %s138 = smul.addr %s137, 4
      %s139 = scalar_lea.vmem %s0, %s138
      %p140 = scmp.lt.s32.totalorder %s16, 1
      %s141 = scalar_select %p140, %s16, 1
      %p142 = scmp.lt.s32.totalorder %s17, 1
      %s143 = scalar_select %p142, %s17, 1
      %s144 = smul.addr %s141, 2
      %s145 = sadd.s32 %s143, %s144
      %s146 = smul.addr %s145, 2
      %s147 = scalar_lea.vmem %s1, %s146
      %v148 = vld [vmem:[%s139] sm:$0xf]
      %vm149 = vcmask 1043456
      %v150 = vsel %vm149, %v148, 0.0
      %v151 = vrot.slane %v150, 4
      %v152 = vadd.f32 %v150, %v151
      %v153 = vrot.slane %v152, 2
      %v154 = vadd.f32 %v152, %v153
      %v155 = vrot.slane %v154, 1
      %v156 = vadd.f32 %v154, %v155
      %v157 = vmul.f32 %v156, 0.25
      %158 = vst [vmem:[%s147] sm:$0x1] %v157
      %v159 = vsel %vm149, %v148, -inf
      %v160 = vrot.slane %v159, 4
      %v161 = vmax.f32 %v159, %v160
      %v162 = vrot.slane %v161, 2
      %v163 = vmax.f32 %v161, %v162
      %v164 = vrot.slane %v163, 1
      %v165 = vmax.f32 %v163, %v164
      %166 = vst [vmem:[%s147 + $0x1] sm:$0x1] %v165
      %p167 = scmp.lt.s32.totalorder %s16, 1
      %s168 = scalar_select %p167, %s16, 1
      %p169 = scmp.lt.s32.totalorder %s17, 1
      %s170 = scalar_select %p169, %s17, 1
      %s171 = smul.addr %s168, 2
      %s172 = sadd.s32 %s170, %s171
      %s173 = smul.addr %s172, 2
      %s174 = scalar_lea.vmem %s1, %s173
      // Predicated region
      $region25: #{spatial_attention.2} parent=23 // pred_check
        %p175 = pneg %p72
      $region26: #{spatial_attention.2} parent=23 // pred_check_branch
        %177 = sbr.rel (%p175) target = $region28
      $region27: #{spatial_attention.2} parent=23 // pred_region
        _
      $region28: #{spatial_attention.2} parent=23 // pred_fallthru
        _
    $region24: #{spatial_attention.2} parent=5 // pred_fallthru
      _
    %p178 = scmp.le.s32.totalorder 2, %s7
    // Predicated region
    $region29: #{spatial_attention.2} parent=5 // pred_check
      %p179 = pneg %p178
    $region30: #{spatial_attention.2} parent=5 // pred_check_branch
      %181 = sbr.rel (%p179) target = $region32
    $region31: #{spatial_attention.2} parent=5 // pred_region
      %s182 = ssub.s32 %s7, 2
      // Predicated region
      $region33: #{spatial_attention.2} parent=31 // pred_check
        %p183 = pneg %p78
      $region34: #{spatial_attention.2} parent=31 // pred_check_branch
        %185 = sbr.rel (%p183) target = $region36
      $region35: #{spatial_attention.2} parent=31 // pred_region
        %p186 = scmp.lt.s32.totalorder %s18, 1
        %s187 = scalar_select %p186, %s18, 1
        %p188 = scmp.lt.s32.totalorder %s19, 1
        %s189 = scalar_select %p188, %s19, 1
        %s190 = smul.addr %s187, 2
        %s191 = sadd.s32 %s189, %s190
        %s192 = smul.addr %s191, 2
        %s193 = scalar_lea.vmem %s1, %s192
      $region36: #{spatial_attention.2} parent=31 // pred_fallthru
        _
    $region32: #{spatial_attention.2} parent=5 // pred_fallthru
      _
  $region6: #{spatial_attention.2} parent=0 // loop_footer
    %s11 = sadd.s32 1, %s7
  $region7: #{spatial_attention.2} parent=0 // loop_footer_branch
    %6 = sbr.rel target = $region3
  $region8: #{spatial_attention.2} parent=0 // loop_exit
    _

// kernel: spatial_attention.3
$region0: #{spatial_attention.3}
  #allocation0 [shape = 'u32[]', space=smem, size = 0x4, offset = 0x4, fixed_abs, tag = 'smem constant byte address 0x4 - core index']
  #allocation1 [shape = 'u32[144,128]{1,0:T(1,128)}', space=vmem, size = 0x12000, scoped, tag = 'internal scratch']
  %s0 = inlined_call_operand.vmem [shape: f32[2,4,256], index: 0, kind: input, shape index: {}]
  %s1 = inlined_call_operand.vmem [shape: f32[2,1,256], index: 1, kind: input, shape index: {}]
  %s2 = inlined_call_operand.vmem [shape: f32[2,4,256], index: 2, kind: output, shape index: {}]
  %s3 = sld [smem:[#allocation0]]
  $region41: #{spatial_attention.3} parent=0
    _
  %s5 = ssub.s32 1, %s3
  %s6 = scalar_select 0, %s5, %s3
  loop: start=0, step=1, limit=6
  $region2: #{spatial_attention.3} parent=0 // loop_pre_header
    _
  $region3: #{spatial_attention.3} parent=0 // loop_header
    %s8 = sphi 0, %s12
    %p9 = scmp.ge.s32.totalorder %s8, 6
    %s15 = sphi 0, %s27
    %s16 = sphi 0, %s23
    %s17 = sphi 0, %s15
    %s18 = sphi 0, %s16
    %s19 = sphi 0, %s17
    %s20 = sphi 0, %s18
    %s32 = sphi 0, %s34
    %s35 = sphi 0, %s32
    %s36 = sphi 0, %s35
    %s52 = sphi 0, %s36
    %s60 = sphi 0, %s62
    %s63 = sphi 0, %s60
    %s64 = sphi 0, %s63
    %s80 = sphi 0, %s64
    %s88 = sphi 0, %s90
    %s91 = sphi 0, %s88
    %s92 = sphi 0, %s91
    %s108 = sphi 0, %s92
  $region4: #{spatial_attention.3} parent=0 // loop_header_branch
    %11 = sbr.rel (%p9) target = $region8
  $region5: #{spatial_attention.3} parent=0 // loop_body
    %s13 = ssub.s32 %s8, 1
    %s14 = ssub.s32 %s8, 2
    %s21 = sadd.s32 1, %s16
    %p22 = scmp.ge.s32.totalorder %s21, 2
    %s23 = scalar_select %p22, 0, %s21
    %s24 = sadd.s32 1, %s15
    %s25 = scalar_select %p22, %s24, %s15
    %p26 = scmp.ge.s32.totalorder %s25, 2
    %s27 = scalar_select %p26, 0, %s25
    %s28 = ssub.s32 %s15, %s27
    %s29 = ssub.s32 %s16, %s23
    %s30 = sor.u32 %s28, %s29
    %p31 = scmp.eq.s32.totalorder %s30, 0
    %s33 = sadd.s32 %s32, 1
    %s34 = scalar_select %p31, %s32, %s33
    %p37 = pneg %p31
    %p38 = scmp.eq.s32.totalorder %s8, 3
    %p39 = por %p37, %p38
    %p40 = scmp.ne.s32.totalorder %s32, %s35
    %p41 = scmp.eq.s32.totalorder %s8, 0
    %p42 = por %p40, %p41
    %p43 = scmp.ne.s32.totalorder %s32, %s35
    %p44 = scmp.eq.s32.totalorder %s13, 3
    %p45 = por %p43, %p44
    %p46 = scmp.ne.s32.totalorder %s35, %s36
    %p47 = scmp.eq.s32.totalorder %s13, 0
    %p48 = por %p46, %p47
    %p49 = scmp.ne.s32.totalorder %s35, %s36
    %p50 = scmp.eq.s32.totalorder %s14, 3
    %p51 = por %p49, %p50
    %p53 = scmp.ne.s32.totalorder %s36, %s52
    %p54 = scmp.eq.s32.totalorder %s14, 0
    %p55 = por %p53, %p54
    %s56 = ssub.s32 %s15, %s27
    %s57 = ssub.s32 %s16, %s23
    %s58 = sor.u32 %s56, %s57
    %p59 = scmp.eq.s32.totalorder %s58, 0
    %s61 = sadd.s32 %s60, 1
    %s62 = scalar_select %p59, %s60, %s61
    %p65 = pneg %p59
    %p66 = scmp.eq.s32.totalorder %s8, 3
    %p67 = por %p65, %p66
    %p68 = scmp.ne.s32.totalorder %s60, %s63
    %p69 = scmp.eq.s32.totalorder %s8, 0
    %p70 = por %p68, %p69
    %p71 = scmp.ne.s32.totalorder %s60, %s63
    %p72 = scmp.eq.s32.totalorder %s13, 3
    %p73 = por %p71, %p72
    %p74 = scmp.ne.s32.totalorder %s63, %s64
    %p75 = scmp.eq.s32.totalorder %s13, 0
    %p76 = por %p74, %p75
    %p77 = scmp.ne.s32.totalorder %s63, %s64
    %p78 = scmp.eq.s32.totalorder %s14, 3
    %p79 = por %p77, %p78
    %p81 = scmp.ne.s32.totalorder %s64, %s80
    %p82 = scmp.eq.s32.totalorder %s14, 0
    %p83 = por %p81, %p82
    %s84 = ssub.s32 %s15, %s27
    %s85 = ssub.s32 %s16, %s23
    %s86 = sor.u32 %s84, %s85
    %p87 = scmp.eq.s32.totalorder %s86, 0
    %s89 = sadd.s32 %s88, 1
    %s90 = scalar_select %p87, %s88, %s89
    %p93 = pneg %p87
    %p94 = scmp.eq.s32.totalorder %s8, 3
    %p95 = por %p93, %p94
    %p96 = scmp.ne.s32.totalorder %s88, %s91
    %p97 = scmp.eq.s32.totalorder %s8, 0
    %p98 = por %p96, %p97
    %p99 = scmp.ne.s32.totalorder %s88, %s91
    %p100 = scmp.eq.s32.totalorder %s13, 3
    %p101 = por %p99, %p100
    %p102 = scmp.ne.s32.totalorder %s91, %s92
    %p103 = scmp.eq.s32.totalorder %s13, 0
    %p104 = por %p102, %p103
    %p105 = scmp.ne.s32.totalorder %s91, %s92
    %p106 = scmp.eq.s32.totalorder %s14, 3
    %p107 = por %p105, %p106
    %p109 = scmp.ne.s32.totalorder %s92, %s108
    %p110 = scmp.eq.s32.totalorder %s14, 0
    %p111 = por %p109, %p110
    %p112 = scmp.le.s32.totalorder 1, %s8
    %p113 = scmp.lt.s32.totalorder %s8, 5
    %p114 = pnand %p112, %p113
    %p115 = pneg %p114
    // Predicated region
    $region9: #{spatial_attention.3} parent=5 // pred_check
      _
    $region10: #{spatial_attention.3} parent=5 // pred_check_branch
      %117 = sbr.rel (%p114) target = $region12
    $region11: #{spatial_attention.3} parent=5 // pred_region
      %s118 = ssub.s32 %s8, 1
    $region12: #{spatial_attention.3} parent=5 // pred_fallthru
      _
    %p119 = scmp.lt.s32.totalorder %s8, 4
    // Predicated region
    $region13: #{spatial_attention.3} parent=5 // pred_check
      %p120 = pneg %p119
    $region14: #{spatial_attention.3} parent=5 // pred_check_branch
      %122 = sbr.rel (%p120) target = $region16
    $region15: #{spatial_attention.3} parent=5 // pred_region
      // Predicated region
      $region17: #{spatial_attention.3} parent=15 // pred_check
        %p123 = pneg %p42
      $region18: #{spatial_attention.3} parent=15 // pred_check_branch
        %125 = sbr.rel (%p123) target = $region20
      $region19: #{spatial_attention.3} parent=15 // pred_region
        %p126 = scmp.lt.s32.totalorder %s15, 1
        %s127 = scalar_select %p126, %s15, 1
        %p128 = scmp.lt.s32.totalorder %s16, 1
        %s129 = scalar_select %p128, %s16, 1
        %s130 = smul.addr %s127, 2
        %s131 = sadd.s32 %s129, %s130
        %s132 = smul.addr %s131, 4
        %s133 = scalar_lea.vmem %s0, %s132
      $region20: #{spatial_attention.3} parent=15 // pred_fallthru
        _
      // Predicated region
      $region21: #{spatial_attention.3} parent=15 // pred_check
        %p134 = pneg %p70
      $region22: #{spatial_attention.3} parent=15 // pred_check_branch
        %136 = sbr.rel (%p134) target = $region24
      $region23: #{spatial_attention.3} parent=15 // pred_region
        %p137 = scmp.lt.s32.totalorder %s15, 1
        %s138 = scalar_select %p137, %s15, 1
        %p139 = scmp.lt.s32.totalorder %s16, 1
        %s140 = scalar_select %p139, %s16, 1
        %s141 = smul.addr %s138, 2
        %s142 = sadd.s32 %s140, %s141
        %s143 = scalar_lea.vmem %s1, %s142
      $region24: #{spatial_attention.3} parent=15 // pred_fallthru
        _
    $region16: #{spatial_attention.3} parent=5 // pred_fallthru
      _
    %p144 = scmp.le.s32.totalorder 1, %s8
    %p145 = scmp.lt.s32.totalorder %s8, 5
    %p146 = pnand %p144, %p145
    %p147 = pneg %p146
    // Predicated region
    $region25: #{spatial_attention.3} parent=5 // pred_check
      _
    $region26: #{spatial_attention.3} parent=5 // pred_check_branch
      %149 = sbr.rel (%p146) target = $region28
    $region27: #{spatial_attention.3} parent=5 // pred_region
      %s150 = ssub.s32 %s8, 1
      %p151 = scmp.lt.s32.totalorder %s17, 1
      %s152 = scalar_select %p151, %s17, 1
      %p153 = scmp.lt.s32.totalorder %s18, 1
      %s154 = scalar_select %p153, %s18, 1
      %s155 = smul.addr %s152, 2
      %s156 = sadd.s32 %s154, %s155
      %s157 = smul.addr %s156, 4
      %s158 = scalar_lea.vmem %s0, %s157
      %p159 = pneg %p48
      %p160 = pneg %p45
      %p161 = scmp.lt.s32.totalorder %s17, 1
      %s162 = scalar_select %p161, %s17, 1
      %p163 = scmp.lt.s32.totalorder %s18, 1
      %s164 = scalar_select %p163, %s18, 1
      %s165 = smul.addr %s162, 2
      %s166 = sadd.s32 %s164, %s165
      %s167 = scalar_lea.vmem %s1, %s166
      %p168 = pneg %p76
      %p169 = pneg %p73
      %p170 = pneg %p104
      %p171 = pneg %p101
      %p172 = scmp.lt.s32.totalorder %s17, 1
      %s173 = scalar_select %p172, %s17, 1
      %p174 = scmp.lt.s32.totalorder %s18, 1
      %s175 = scalar_select %p174, %s18, 1
      %s176 = smul.addr %s173, 2
      %s177 = sadd.s32 %s175, %s176
      %s178 = smul.addr %s177, 4
      %s179 = scalar_lea.vmem %s2, %s178
      %p180 = scmp.lt.s32.totalorder %s17, 1
      %s181 = scalar_select %p180, %s17, 1
      %p182 = scmp.lt.s32.totalorder %s18, 1
      %s183 = scalar_select %p182, %s18, 1
      %s184 = smul.addr %s181, 2
      %s185 = sadd.s32 %s183, %s184
      %s186 = smul.addr %s185, 4
      %s187 = scalar_lea.vmem %s0, %s186
      %p188 = scmp.lt.s32.totalorder %s17, 1
      %s189 = scalar_select %p188, %s17, 1
      %p190 = scmp.lt.s32.totalorder %s18, 1
      %s191 = scalar_select %p190, %s18, 1
      %s192 = smul.addr %s189, 2
      %s193 = sadd.s32 %s191, %s192
      %s194 = scalar_lea.vmem %s1, %s193
      %p195 = scmp.lt.s32.totalorder %s17, 1
      %s196 = scalar_select %p195, %s17, 1
      %p197 = scmp.lt.s32.totalorder %s18, 1
      %s198 = scalar_select %p197, %s18, 1
      %s199 = smul.addr %s196, 2
      %s200 = sadd.s32 %s198, %s199
      %s201 = smul.addr %s200, 4
      %s202 = scalar_lea.vmem %s2, %s201
      %v203 = vld [vmem:[%s194] sm:$0x1]
      %v204 = vxor.u32 %v203, 2147483648
      %v205 = vmul.f32 %v204, 1.442695
      %v206 = vpow.pop %v205
      %v207 = vadd.f32 %v206, 1.0
      %v208 = vrcp.pop %v207
      %v209 = vmul.f32 1.0, %v208
      %v210 = vld [vmem:[%s187] sm:$0xf]
      %v212 = vlaneseq
      %v213 = vshrl.u32 %v212, 7
      %v214 = vsub.s32 0, %v213
      %v215 = vrot.slane %v209, %v214
      %v217 = vmul.f32 %v210, %v215
      %218 = vst [vmem:[%s202] sm:$0xf] %v217
      %p219 = scmp.lt.s32.totalorder %s17, 1
      %s220 = scalar_select %p219, %s17, 1
      %p221 = scmp.lt.s32.totalorder %s18, 1
      %s222 = scalar_select %p221, %s18, 1
      %s223 = smul.addr %s220, 2
      %s224 = sadd.s32 %s222, %s223
      %s225 = smul.addr %s224, 4
      %s226 = scalar_lea.vmem %s2, %s225
      // Predicated region
      $region29: #{spatial_attention.3} parent=27 // pred_check
        %p227 = pneg %p101
      $region30: #{spatial_attention.3} parent=27 // pred_check_branch
        %229 = sbr.rel (%p227) target = $region32
      $region31: #{spatial_attention.3} parent=27 // pred_region
        _
      $region32: #{spatial_attention.3} parent=27 // pred_fallthru
        _
    $region28: #{spatial_attention.3} parent=5 // pred_fallthru
      _
    %p230 = scmp.le.s32.totalorder 2, %s8
    // Predicated region
    $region33: #{spatial_attention.3} parent=5 // pred_check
      %p231 = pneg %p230
    $region34: #{spatial_attention.3} parent=5 // pred_check_branch
      %233 = sbr.rel (%p231) target = $region36
    $region35: #{spatial_attention.3} parent=5 // pred_region
      %s234 = ssub.s32 %s8, 2
      // Predicated region
      $region37: #{spatial_attention.3} parent=35 // pred_check
        %p235 = pneg %p107
      $region38: #{spatial_attention.3} parent=35 // pred_check_branch
        %237 = sbr.rel (%p235) target = $region40
      $region39: #{spatial_attention.3} parent=35 // pred_region
        %p238 = scmp.lt.s32.totalorder %s19, 1
        %s239 = scalar_select %p238, %s19, 1
        %p240 = scmp.lt.s32.totalorder %s20, 1
        %s241 = scalar_select %p240, %s20, 1
        %s242 = smul.addr %s239, 2
        %s243 = sadd.s32 %s241, %s242
        %s244 = smul.addr %s243, 4
        %s245 = scalar_lea.vmem %s2, %s244
      $region40: #{spatial_attention.3} parent=35 // pred_fallthru
        _
    $region36: #{spatial_attention.3} parent=5 // pred_fallthru
      _
  $region6: #{spatial_attention.3} parent=0 // loop_footer
    %s12 = sadd.s32 1, %s8
  $region7: #{spatial_attention.3} parent=0 // loop_footer_branch
    %7 = sbr.rel target = $region3
  $region8: #{spatial_attention.3} parent=0 // loop_exit
    _

</llo_original>
